<compile_context>
chip_gen: v6e
topology: v6e:2x2x1
jax: 0.10.0
libtpu: 0.0.40
codegen_flags: <defaults>
</compile_context>

<pallas_src>
import functools

import jax
import jax.numpy as jnp
from jax.experimental import pallas as pl
from jax.experimental.pallas import tpu as pltpu

MARGIN = 1.0
EPS = 1e-6  # torch F.pairwise_distance default eps


def _triplet_loss_kernel(a_ref, p_ref, n_ref, out_ref, *, margin, eps,
                         batch_folded, tile, k, d):
    i = pl.program_id(0)

    # Inputs arrive in their native dtype; cast to f32 on the VPU.
    a = a_ref[...].astype(jnp.float32)          # (tile, k*d)
    p = p_ref[...].astype(jnp.float32)
    n = n_ref[...].astype(jnp.float32)

    dp = a - p + eps
    dn = a - n + eps
    sp = dp * dp
    sn = dn * dn

    # Segmented per-original-row reduction: folded row r holds original rows
    # r*k .. r*k+k-1, one per static lane slice of width d (k == 1 when no
    # folding was applied, in which case this is the plain full-lane reduce).
    acc = jnp.zeros((tile, 1), jnp.float32)
    for j in range(k):
        lo = j * d
        pos = jnp.sqrt(jnp.sum(sp[:, lo:lo + d], axis=-1, keepdims=True))
        neg = jnp.sqrt(jnp.sum(sn[:, lo:lo + d], axis=-1, keepdims=True))
        acc = acc + jnp.maximum(pos - neg + margin, 0.0)

    # Mask folded rows past the true folded batch (padding of a partial last
    # block is undefined data, possibly NaN/Inf; jnp.where selects 0 anyway).
    row = i * tile + jax.lax.broadcasted_iota(jnp.int32, (tile, 1), 0)
    acc = jnp.where(row < batch_folded, acc, 0.0)

    # Per-block partial sum, broadcast into a lane-dense (1, 8, 128) block.
    out_ref[...] = jnp.broadcast_to(jnp.sum(acc), out_ref.shape)


def _vmem_capacity_bytes():
    try:
        cap = getattr(pltpu.get_tpu_info(), "vmem_capacity_bytes", None)
        if cap:
            return int(cap)
    except Exception:
        pass
    return 64 * 1024 * 1024   # conservative fallback: v7x per-TensorCore VMEM


def _fold_factor(batch, dim):
    """Largest k with k | batch, k*dim <= 128 (k <= 32 bounds kernel unroll)."""
    if dim >= 128 or batch <= 0:
        return 1
    kmax = max(1, min(128 // dim, batch, 32))
    for k in range(kmax, 0, -1):
        if batch % k == 0:
            return k
    return 1


def _choose_tile(batch_f, dim_f, itemsize, block_rows=None):
    """Pick the batch tile (rows of the folded matrix)."""
    # Minimum sublane tile for the dtype: 8 (f32), 16 (bf16), 32 (int8/fp8).
    sub = max(8, 32 // max(1, itemsize))
    if block_rows is not None:
        return int(block_rows)
    if batch_f <= sub:
        return batch_f                          # full-extent block: always legal

    def _round_up(x, m):
        return ((x + m - 1) // m) * m

    budget = (_vmem_capacity_bytes() * 3) // 4
    # 3 inputs x 2 pipeline buffers (native dtype) + ~6 full-tile f32
    # temporaries (a/p/n casts, dp/dn, squares) per folded row.
    per_row = dim_f * (3 * 2 * itemsize + 6 * 4)
    tb = max(sub, budget // per_row)

    # Bytes-based floor: >= ~2 MiB of input per buffer (amortizes ~0.35 us
    # per-grid-step overhead, keeps DMA near the HBM roofline).
    floor_rows = _round_up(max(sub, -(-(2 << 20) // (dim_f * itemsize))), sub)
    # Prefer >= 4 grid blocks (keeps both v7x TensorCores busy and the pipeline
    # primed) but never shrink a tile below the 2 MiB floor.
    split_rows = _round_up(-(-batch_f // 4), sub)
    if split_rows >= floor_rows:
        tb = min(tb, split_rows)

    tb = max(sub, (tb // sub) * sub)
    return batch_f if batch_f <= tb else tb


def _vmem_limit_bytes(tb, dim_f, itemsize):
    need = tb * dim_f * (3 * 2 * itemsize + 6 * 4) + (2 << 20)
    cap = _vmem_capacity_bytes()
    return int(min((cap * 7) // 8, max(need, 32 * 1024 * 1024)))


@functools.partial(jax.jit, static_argnames=("block_rows",))
def triplet_loss(anchor, positive, negative, block_rows=None):
    assert anchor.shape == positive.shape == negative.shape
    assert anchor.ndim == 2
    B, D = anchor.shape

    # Lane folding: (B, D) -> (B/k, k*D); row-major reshape => no data
    # movement; each folded row holds k consecutive original rows.
    k = _fold_factor(B, D)
    bf, df = B // k, D * k
    a = anchor.reshape(bf, df)
    p = positive.reshape(bf, df)
    n = negative.reshape(bf, df)

    itemsize = jnp.dtype(anchor.dtype).itemsize
    tb = _choose_tile(bf, df, itemsize, block_rows)
    num_blocks = pl.cdiv(bf, tb)

    kernel = functools.partial(
        _triplet_loss_kernel, margin=MARGIN, eps=EPS,
        batch_folded=bf, tile=tb, k=k, d=D,
    )

    partial_sums = pl.pallas_call(
        kernel,
        out_shape=jax.ShapeDtypeStruct((num_blocks, 8, 128), jnp.float32),
        grid=(num_blocks,),
        in_specs=[
            pl.BlockSpec((tb, df), lambda i: (i, 0)),
            pl.BlockSpec((tb, df), lambda i: (i, 0)),
            pl.BlockSpec((tb, df), lambda i: (i, 0)),
        ],
        out_specs=pl.BlockSpec((1, 8, 128), lambda i: (i, 0, 0)),
        compiler_params=pltpu.CompilerParams(
            dimension_semantics=("parallel",),
            vmem_limit_bytes=_vmem_limit_bytes(tb, df, itemsize),
        ),
    )(a, p, n)

    # reduction='mean' over the true batch size.
    return jnp.sum(partial_sums[:, 0, 0]) / B


def _reference(anchor, positive, negative):
    a = anchor.astype(jnp.float32)
    p = positive.astype(jnp.float32)
    n = negative.astype(jnp.float32)
    pos_dist = jnp.sqrt(jnp.sum((a - p + EPS) ** 2, axis=-1))
    neg_dist = jnp.sqrt(jnp.sum((a - n + EPS) ** 2, axis=-1))
    return jnp.mean(jnp.maximum(pos_dist - neg_dist + MARGIN, 0.0))


if __name__ == "__main__":
    key = jax.random.PRNGKey(0)

    # Case 1: canonical small shape (batch=8, hidden=32), f32.  Lane-folded
    # k=4 -> folded (2, 128), single full-extent block.
    ka, kp, kn = jax.random.split(key, 3)
    anchor = jax.random.normal(ka, (8, 32), dtype=jnp.float32)
    positive = jax.random.normal(kp, (8, 32), dtype=jnp.float32)
    negative = jax.random.normal(kn, (8, 32), dtype=jnp.float32)
    loss = triplet_loss(anchor, positive, negative)
    jax.block_until_ready(loss)
    ref = _reference(anchor, positive, negative)
    assert jnp.allclose(loss, ref, atol=1e-5, rtol=1e-5), (loss, ref)

    # Case 2: multi-block grid with a partial last block (batch=40 -> 10 folded
    # rows, tile=8) exercising pipelining + padded-row masking.
    kb = jax.random.fold_in(key, 1)
    ka2, kp2, kn2 = jax.random.split(kb, 3)
    anchor2 = jax.random.normal(ka2, (40, 32), dtype=jnp.float32)
    positive2 = jax.random.normal(kp2, (40, 32), dtype=jnp.float32)
    negative2 = jax.random.normal(kn2, (40, 32), dtype=jnp.float32)
    loss2 = triplet_loss(anchor2, positive2, negative2, block_rows=8)
    jax.block_until_ready(loss2)
    ref2 = _reference(anchor2, positive2, negative2)
    assert jnp.allclose(loss2, ref2, atol=1e-5, rtol=1e-5), (loss2, ref2)

    # Case 3: bf16 inputs, D >= 128 (no folding), auto tile sizing.
    kc = jax.random.fold_in(key, 2)
    ka3, kp3, kn3 = jax.random.split(kc, 3)
    anchor3 = jax.random.normal(ka3, (24, 256), dtype=jnp.bfloat16)
    positive3 = jax.random.normal(kp3, (24, 256), dtype=jnp.bfloat16)
    negative3 = jax.random.normal(kn3, (24, 256), dtype=jnp.bfloat16)
    loss3 = triplet_loss(anchor3, positive3, negative3)
    jax.block_until_ready(loss3)
    ref3 = _reference(anchor3, positive3, negative3)
    assert jnp.allclose(loss3, ref3, atol=1e-4, rtol=1e-4), (loss3, ref3)

    print("KERNEL_OK")
</pallas_src>

<mosaic_0001>
module attributes {stable_mosaic.version = 11 : i64} {
  func.func @_triplet_loss_kernel(%arg0: i32, %arg1: memref<2x128xf32, #tpu.memory_space<vmem>>, %arg2: memref<2x128xf32, #tpu.memory_space<vmem>>, %arg3: memref<2x128xf32, #tpu.memory_space<vmem>>, %arg4: memref<1x8x128xf32, #tpu.memory_space<vmem>>) attributes {dimension_semantics = [#tpu.dimension_semantics<parallel>], iteration_bounds = array<i64: 1>, scalar_prefetch = 0 : i64, scratch_operands = 0 : i64, tpu.core_type = #tpu.core_type<tc>, window_params = [{transform_indices = @transform_0, window_bounds = array<i64: 2, 128>}, {transform_indices = @transform_1, window_bounds = array<i64: 2, 128>}, {transform_indices = @transform_2, window_bounds = array<i64: 2, 128>}, {transform_indices = @transform_3, window_bounds = array<i64: 1, 8, 128>}]} {
    %c0 = arith.constant 0 : index
    %c0_0 = arith.constant 0 : index
    %0 = vector.load %arg1[%c0, %c0_0] : memref<2x128xf32, #tpu.memory_space<vmem>>, vector<2x128xf32>
    %c0_1 = arith.constant 0 : index
    %c0_2 = arith.constant 0 : index
    %1 = vector.load %arg2[%c0_1, %c0_2] : memref<2x128xf32, #tpu.memory_space<vmem>>, vector<2x128xf32>
    %c0_3 = arith.constant 0 : index
    %c0_4 = arith.constant 0 : index
    %2 = vector.load %arg3[%c0_3, %c0_4] : memref<2x128xf32, #tpu.memory_space<vmem>>, vector<2x128xf32>
    %3 = arith.subf %0, %1 : vector<2x128xf32>
    %cst = arith.constant 9.99999997E-7 : f32
    %4 = vector.broadcast %cst : f32 to vector<2x128xf32>
    %5 = arith.addf %3, %4 : vector<2x128xf32>
    %6 = arith.subf %0, %2 : vector<2x128xf32>
    %cst_5 = arith.constant 9.99999997E-7 : f32
    %7 = vector.broadcast %cst_5 : f32 to vector<2x128xf32>
    %8 = arith.addf %6, %7 : vector<2x128xf32>
    %9 = arith.mulf %5, %5 : vector<2x128xf32>
    %10 = arith.mulf %8, %8 : vector<2x128xf32>
    %cst_6 = arith.constant 0.000000e+00 : f32
    %11 = vector.broadcast %cst_6 : f32 to vector<2x1xf32>
    %12 = vector.extract_strided_slice %9 {offsets = [0, 0], sizes = [2, 32], strides = [1, 1]} : vector<2x128xf32> to vector<2x32xf32>
    %cst_7 = arith.constant dense<0.000000e+00> : vector<2xf32>
    %13 = vector.multi_reduction <add>, %12, %cst_7 [1] : vector<2x32xf32> to vector<2xf32>
    %14 = vector.shape_cast %13 : vector<2xf32> to vector<2x1xf32>
    %15 = math.sqrt %14 : vector<2x1xf32>
    %16 = vector.extract_strided_slice %10 {offsets = [0, 0], sizes = [2, 32], strides = [1, 1]} : vector<2x128xf32> to vector<2x32xf32>
    %cst_8 = arith.constant dense<0.000000e+00> : vector<2xf32>
    %17 = vector.multi_reduction <add>, %16, %cst_8 [1] : vector<2x32xf32> to vector<2xf32>
    %18 = vector.shape_cast %17 : vector<2xf32> to vector<2x1xf32>
    %19 = math.sqrt %18 : vector<2x1xf32>
    %20 = arith.subf %15, %19 : vector<2x1xf32>
    %cst_9 = arith.constant 1.000000e+00 : f32
    %21 = vector.broadcast %cst_9 : f32 to vector<2x1xf32>
    %22 = arith.addf %20, %21 : vector<2x1xf32>
    %cst_10 = arith.constant 0.000000e+00 : f32
    %23 = vector.broadcast %cst_10 : f32 to vector<2x1xf32>
    %24 = arith.maximumf %22, %23 : vector<2x1xf32>
    %25 = arith.addf %11, %24 : vector<2x1xf32>
    %26 = vector.extract_strided_slice %9 {offsets = [0, 32], sizes = [2, 32], strides = [1, 1]} : vector<2x128xf32> to vector<2x32xf32>
    %cst_11 = arith.constant dense<0.000000e+00> : vector<2xf32>
    %27 = vector.multi_reduction <add>, %26, %cst_11 [1] : vector<2x32xf32> to vector<2xf32>
    %28 = vector.shape_cast %27 : vector<2xf32> to vector<2x1xf32>
    %29 = math.sqrt %28 : vector<2x1xf32>
    %30 = vector.extract_strided_slice %10 {offsets = [0, 32], sizes = [2, 32], strides = [1, 1]} : vector<2x128xf32> to vector<2x32xf32>
    %cst_12 = arith.constant dense<0.000000e+00> : vector<2xf32>
    %31 = vector.multi_reduction <add>, %30, %cst_12 [1] : vector<2x32xf32> to vector<2xf32>
    %32 = vector.shape_cast %31 : vector<2xf32> to vector<2x1xf32>
    %33 = math.sqrt %32 : vector<2x1xf32>
    %34 = arith.subf %29, %33 : vector<2x1xf32>
    %cst_13 = arith.constant 1.000000e+00 : f32
    %35 = vector.broadcast %cst_13 : f32 to vector<2x1xf32>
    %36 = arith.addf %34, %35 : vector<2x1xf32>
    %cst_14 = arith.constant 0.000000e+00 : f32
    %37 = vector.broadcast %cst_14 : f32 to vector<2x1xf32>
    %38 = arith.maximumf %36, %37 : vector<2x1xf32>
    %39 = arith.addf %25, %38 : vector<2x1xf32>
    %40 = vector.extract_strided_slice %9 {offsets = [0, 64], sizes = [2, 32], strides = [1, 1]} : vector<2x128xf32> to vector<2x32xf32>
    %cst_15 = arith.constant dense<0.000000e+00> : vector<2xf32>
    %41 = vector.multi_reduction <add>, %40, %cst_15 [1] : vector<2x32xf32> to vector<2xf32>
    %42 = vector.shape_cast %41 : vector<2xf32> to vector<2x1xf32>
    %43 = math.sqrt %42 : vector<2x1xf32>
    %44 = vector.extract_strided_slice %10 {offsets = [0, 64], sizes = [2, 32], strides = [1, 1]} : vector<2x128xf32> to vector<2x32xf32>
    %cst_16 = arith.constant dense<0.000000e+00> : vector<2xf32>
    %45 = vector.multi_reduction <add>, %44, %cst_16 [1] : vector<2x32xf32> to vector<2xf32>
    %46 = vector.shape_cast %45 : vector<2xf32> to vector<2x1xf32>
    %47 = math.sqrt %46 : vector<2x1xf32>
    %48 = arith.subf %43, %47 : vector<2x1xf32>
    %cst_17 = arith.constant 1.000000e+00 : f32
    %49 = vector.broadcast %cst_17 : f32 to vector<2x1xf32>
    %50 = arith.addf %48, %49 : vector<2x1xf32>
    %cst_18 = arith.constant 0.000000e+00 : f32
    %51 = vector.broadcast %cst_18 : f32 to vector<2x1xf32>
    %52 = arith.maximumf %50, %51 : vector<2x1xf32>
    %53 = arith.addf %39, %52 : vector<2x1xf32>
    %54 = vector.extract_strided_slice %9 {offsets = [0, 96], sizes = [2, 32], strides = [1, 1]} : vector<2x128xf32> to vector<2x32xf32>
    %cst_19 = arith.constant dense<0.000000e+00> : vector<2xf32>
    %55 = vector.multi_reduction <add>, %54, %cst_19 [1] : vector<2x32xf32> to vector<2xf32>
    %56 = vector.shape_cast %55 : vector<2xf32> to vector<2x1xf32>
    %57 = math.sqrt %56 : vector<2x1xf32>
    %58 = vector.extract_strided_slice %10 {offsets = [0, 96], sizes = [2, 32], strides = [1, 1]} : vector<2x128xf32> to vector<2x32xf32>
    %cst_20 = arith.constant dense<0.000000e+00> : vector<2xf32>
    %59 = vector.multi_reduction <add>, %58, %cst_20 [1] : vector<2x32xf32> to vector<2xf32>
    %60 = vector.shape_cast %59 : vector<2xf32> to vector<2x1xf32>
    %61 = math.sqrt %60 : vector<2x1xf32>
    %62 = arith.subf %57, %61 : vector<2x1xf32>
    %cst_21 = arith.constant 1.000000e+00 : f32
    %63 = vector.broadcast %cst_21 : f32 to vector<2x1xf32>
    %64 = arith.addf %62, %63 : vector<2x1xf32>
    %cst_22 = arith.constant 0.000000e+00 : f32
    %65 = vector.broadcast %cst_22 : f32 to vector<2x1xf32>
    %66 = arith.maximumf %64, %65 : vector<2x1xf32>
    %67 = arith.addf %53, %66 : vector<2x1xf32>
    %c2_i32 = arith.constant 2 : i32
    %68 = arith.muli %arg0, %c2_i32 : i32
    %69 = tpu.iota {dimensions = array<i32: 0>} : vector<2x1xi32>
    %70 = vector.broadcast %68 : i32 to vector<2x1xi32>
    %71 = arith.addi %70, %69 : vector<2x1xi32>
    %c2_i32_23 = arith.constant 2 : i32
    %72 = vector.broadcast %c2_i32_23 : i32 to vector<2x1xi32>
    %73 = arith.cmpi slt, %71, %72 : vector<2x1xi32>
    %cst_24 = arith.constant 0.000000e+00 : f32
    %74 = vector.broadcast %cst_24 : f32 to vector<2x1xf32>
    %75 = arith.select %73, %67, %74 : vector<2x1xi1>, vector<2x1xf32>
    %76 = vector.shape_cast %75 : vector<2x1xf32> to vector<1x2x1xf32>
    %cst_25 = arith.constant dense<0.000000e+00> : vector<1xf32>
    %77 = vector.multi_reduction <add>, %76, %cst_25 [1, 2] : vector<1x2x1xf32> to vector<1xf32>
    %78 = vector.shape_cast %77 : vector<1xf32> to vector<1x1x1xf32>
    %79 = vector.extract %78[0, 0, 0] : f32 from vector<1x1x1xf32>
    %80 = vector.broadcast %79 : f32 to vector<1x8x128xf32>
    %c0_26 = arith.constant 0 : index
    %c0_27 = arith.constant 0 : index
    %c0_28 = arith.constant 0 : index
    %81 = vector.load %arg4[%c0_26, %c0_27, %c0_28] : memref<1x8x128xf32, #tpu.memory_space<vmem>>, vector<1x8x128xf32>
    tpu.vector_store %arg4[%c0_26, %c0_27, %c0_28], %80 {strides = array<i32>} : memref<1x8x128xf32, #tpu.memory_space<vmem>>, vector<1x8x128xf32>,
    return
  }
  func.func @transform_0(%arg0: i32) -> (i32, i32) {
    %c0_i32 = arith.constant 0 : i32
    %c0_i32_0 = arith.constant 0 : i32
    return %arg0, %c0_i32 : i32, i32
  }
  func.func @transform_1(%arg0: i32) -> (i32, i32) {
    %c0_i32 = arith.constant 0 : i32
    %c0_i32_0 = arith.constant 0 : i32
    return %arg0, %c0_i32 : i32, i32
  }
  func.func @transform_2(%arg0: i32) -> (i32, i32) {
    %c0_i32 = arith.constant 0 : i32
    %c0_i32_0 = arith.constant 0 : i32
    return %arg0, %c0_i32 : i32, i32
  }
  func.func @transform_3(%arg0: i32) -> (i32, i32, i32) {
    %c0_i32 = arith.constant 0 : i32
    %c0_i32_0 = arith.constant 0 : i32
    %c0_i32_1 = arith.constant 0 : i32
    return %arg0, %c0_i32, %c0_i32_0 : i32, i32, i32
  }
}

</mosaic_0001>

<llo_original>
// kernel: triplet_loss.1
$region0: #{triplet_loss.1}
  #allocation0 [shape = 'u32[]', space=smem, size = 0x4, offset = 0x4, fixed_abs, tag = 'smem constant byte address 0x4 - core index']
  #allocation1 [shape = 'u32[144,128]{1,0:T(1,128)}', space=vmem, size = 0x12000, scoped, tag = 'internal scratch']
  %s0 = inlined_call_operand.vmem [shape: f32[2,128], index: 0, kind: input, shape index: {}]
  %s1 = inlined_call_operand.vmem [shape: f32[2,128], index: 1, kind: input, shape index: {}]
  %s2 = inlined_call_operand.vmem [shape: f32[2,128], index: 2, kind: input, shape index: {}]
  %s3 = inlined_call_operand.vmem [shape: f32[1,8,128], index: 3, kind: output, shape index: {}]
  %s4 = sld [smem:[#allocation0]]
  $region22: #{triplet_loss.1} parent=0
    _
  %s6 = ssub.s32 1, %s4
  %s7 = scalar_select 0, %s6, %s4
  // Predicated region
  $region2: #{triplet_loss.1} parent=0 // pred_check
    _
  $region3: #{triplet_loss.1} parent=0 // pred_check_branch
    %9 = sbr.rel (0) target = $region5
  $region4: #{triplet_loss.1} parent=0 // pred_region
    _
  $region5: #{triplet_loss.1} parent=0 // pred_fallthru
    _
  // Predicated region
  $region6: #{triplet_loss.1} parent=0 // pred_check
    _
  $region7: #{triplet_loss.1} parent=0 // pred_check_branch
    %11 = sbr.rel (0) target = $region9
  $region8: #{triplet_loss.1} parent=0 // pred_region
    _
  $region9: #{triplet_loss.1} parent=0 // pred_fallthru
    _
  // Predicated region
  $region10: #{triplet_loss.1} parent=0 // pred_check
    _
  $region11: #{triplet_loss.1} parent=0 // pred_check_branch
    %13 = sbr.rel (0) target = $region13
  $region12: #{triplet_loss.1} parent=0 // pred_region
    _
  $region13: #{triplet_loss.1} parent=0 // pred_fallthru
    _
  %v14 = vld [vmem:[%s0] sm:$0x3]
  %v15 = vld [vmem:[%s1] sm:$0x3]
  %v16 = vld [vmem:[%s2] sm:$0x3]
  %v17 = vsub.f32 %v14, %v15
  %v18 = vadd.f32 %v17, 1e-06
  %v19 = vsub.f32 %v14, %v16
  %v20 = vadd.f32 %v19, 1e-06
  %v21 = vmul.f32 %v18, %v18
  %v22 = vmul.f32 %v20, %v20
  %vm23 = vcmask 254976
  %v24 = vsel %vm23, %v21, 0.0
  %25 = vadd.xlane.f32.xlu0 %v24
  %v26 = vpop.xlane.xlu0 %25
  %v27 = vrsqrt.pop %v26
  %v28 = vmul.f32 %v26, %v27
  %vm29 = vcmp.eq.f32.partialorder %v26, inf
  %v30 = vsel %vm29, %v26, %v28
  %vm31 = vcmp.eq.f32.partialorder %v26, 0.0
  %v32 = vand.u32 %v26, 2147483648
  %v33 = vsel %vm31, %v32, %v30
  %v34 = vsel %vm23, %v22, 0.0
  %35 = vadd.xlane.f32.xlu0 %v34
  %v36 = vpop.xlane.xlu0 %35
  %v37 = vrsqrt.pop %v36
  %v38 = vmul.f32 %v36, %v37
  %vm39 = vcmp.eq.f32.partialorder %v36, inf
  %v40 = vsel %vm39, %v36, %v38
  %vm41 = vcmp.eq.f32.partialorder %v36, 0.0
  %v42 = vand.u32 %v36, 2147483648
  %v43 = vsel %vm41, %v42, %v40
  %v44 = vsub.f32 %v33, %v43
  %v45 = vadd.f32 %v44, 1.0
  %v46 = vmax.f32 %v45, 0.0
  %v47 = vadd.f32 %v46, 0.0
  %49 = vrot.lane.b32.xlu0 %v21, 96
  %v50 = vpop.permute.xlu0 %49
  %v52 = vsel %vm23, %v50, 0.0
  %53 = vadd.xlane.f32.xlu0 %v52
  %v54 = vpop.xlane.xlu0 %53
  %v55 = vrsqrt.pop %v54
  %v56 = vmul.f32 %v54, %v55
  %vm57 = vcmp.eq.f32.partialorder %v54, inf
  %v58 = vsel %vm57, %v54, %v56
  %vm59 = vcmp.eq.f32.partialorder %v54, 0.0
  %v60 = vand.u32 %v54, 2147483648
  %v61 = vsel %vm59, %v60, %v58
  %63 = vrot.lane.b32.xlu0 %v22, 96
  %v64 = vpop.permute.xlu0 %63
  %v66 = vsel %vm23, %v64, 0.0
  %67 = vadd.xlane.f32.xlu0 %v66
  %v68 = vpop.xlane.xlu0 %67
  %v69 = vrsqrt.pop %v68
  %v70 = vmul.f32 %v68, %v69
  %vm71 = vcmp.eq.f32.partialorder %v68, inf
  %v72 = vsel %vm71, %v68, %v70
  %vm73 = vcmp.eq.f32.partialorder %v68, 0.0
  %v74 = vand.u32 %v68, 2147483648
  %v75 = vsel %vm73, %v74, %v72
  %v76 = vsub.f32 %v61, %v75
  %v77 = vadd.f32 %v76, 1.0
  %v78 = vmax.f32 %v77, 0.0
  %v79 = vadd.f32 %v47, %v78
  %80 = vrot.lane.b32.xlu0 %v21, 64
  %v81 = vpop.permute.xlu0 %80
  %v83 = vsel %vm23, %v81, 0.0
  %84 = vadd.xlane.f32.xlu0 %v83
  %v85 = vpop.xlane.xlu0 %84
  %v86 = vrsqrt.pop %v85
  %v87 = vmul.f32 %v85, %v86
  %vm88 = vcmp.eq.f32.partialorder %v85, inf
  %v89 = vsel %vm88, %v85, %v87
  %vm90 = vcmp.eq.f32.partialorder %v85, 0.0
  %v91 = vand.u32 %v85, 2147483648
  %v92 = vsel %vm90, %v91, %v89
  %93 = vrot.lane.b32.xlu0 %v22, 64
  %v94 = vpop.permute.xlu0 %93
  %v96 = vsel %vm23, %v94, 0.0
  %97 = vadd.xlane.f32.xlu0 %v96
  %v98 = vpop.xlane.xlu0 %97
  %v99 = vrsqrt.pop %v98
  %v100 = vmul.f32 %v98, %v99
  %vm101 = vcmp.eq.f32.partialorder %v98, inf
  %v102 = vsel %vm101, %v98, %v100
  %vm103 = vcmp.eq.f32.partialorder %v98, 0.0
  %v104 = vand.u32 %v98, 2147483648
  %v105 = vsel %vm103, %v104, %v102
  %v106 = vsub.f32 %v92, %v105
  %v107 = vadd.f32 %v106, 1.0
  %v108 = vmax.f32 %v107, 0.0
  %v109 = vadd.f32 %v79, %v108
  %110 = vrot.lane.b32.xlu0 %v21, 32
  %v111 = vpop.permute.xlu0 %110
  %v113 = vsel %vm23, %v111, 0.0
  %114 = vadd.xlane.f32.xlu0 %v113
  %v115 = vpop.xlane.xlu0 %114
  %v116 = vrsqrt.pop %v115
  %v117 = vmul.f32 %v115, %v116
  %vm118 = vcmp.eq.f32.partialorder %v115, inf
  %v119 = vsel %vm118, %v115, %v117
  %vm120 = vcmp.eq.f32.partialorder %v115, 0.0
  %v121 = vand.u32 %v115, 2147483648
  %v122 = vsel %vm120, %v121, %v119
  %123 = vrot.lane.b32.xlu0 %v22, 32
  %v124 = vpop.permute.xlu0 %123
  %v126 = vsel %vm23, %v124, 0.0
  %127 = vadd.xlane.f32.xlu0 %v126
  %v128 = vpop.xlane.xlu0 %127
  %v129 = vrsqrt.pop %v128
  %v130 = vmul.f32 %v128, %v129
  %vm131 = vcmp.eq.f32.partialorder %v128, inf
  %v132 = vsel %vm131, %v128, %v130
  %vm133 = vcmp.eq.f32.partialorder %v128, 0.0
  %v134 = vand.u32 %v128, 2147483648
  %v135 = vsel %vm133, %v134, %v132
  %v136 = vsub.f32 %v122, %v135
  %v137 = vadd.f32 %v136, 1.0
  %v138 = vmax.f32 %v137, 0.0
  %v139 = vadd.f32 %v109, %v138
  %s140 = smul.u32 0, 2
  %v141 = vlaneseq
  %v142 = vshrl.u32 %v141, 7
  %v143 = vstv %s140
  %v144 = vadd.s32 %v143, %v142
  %vm145 = vcmp.lt.s32.totalorder %v144, 2
  %v146 = vsel %vm145, %v139, 0.0
  %vm147 = vcmask 1024
  %v148 = vsel %vm147, %v146, 0.0
  %149 = vadd.xlane.f32.xlu0 %v148
  %v150 = vpop.xlane.xlu0 %149
  %v151 = vrot.slane %v150, 4
  %v152 = vadd.f32 %v150, %v151
  %v153 = vrot.slane %v152, 2
  %v154 = vadd.f32 %v152, %v153
  %v155 = vrot.slane %v154, 1
  %v156 = vadd.f32 %v154, %v155
  %s157 = vtos %v156
  %v158 = vstv %s157
  %159 = vst [vmem:[%s3] sm:$0xff] %v158
  // Predicated region
  $region14: #{triplet_loss.1} parent=0 // pred_check
    _
  $region15: #{triplet_loss.1} parent=0 // pred_check_branch
    %161 = sbr.rel (0) target = $region17
  $region16: #{triplet_loss.1} parent=0 // pred_region
    _
  $region17: #{triplet_loss.1} parent=0 // pred_fallthru
    _
  // Predicated region
  $region18: #{triplet_loss.1} parent=0 // pred_check
    _
  $region19: #{triplet_loss.1} parent=0 // pred_check_branch
    %163 = sbr.rel (0) target = $region21
  $region20: #{triplet_loss.1} parent=0 // pred_region
    _
  $region21: #{triplet_loss.1} parent=0 // pred_fallthru
    _

</llo_original>
